<compile_context>
chip_gen: v7x
topology: tpu7x:2x2x1
jax: 0.10.0
libtpu: 0.0.40
codegen_flags: <defaults>
</compile_context>

<pallas_src>
import functools

import jax
import jax.numpy as jnp
from jax.experimental import pallas as pl
from jax.experimental.pallas import tpu as pltpu


def _round_up(x, m):
    return ((x + m - 1) // m) * m


def encoder_kernel(x_ref, w1_ref, b1_ref, w2_ref, b2_ref, out_ref):
    # x_ref:  [tm, 64] f32    w1_ref: [64, 64] bf16   b1_ref: [1, 64] f32
    # w2_ref: [64, 2z] f32    b2_ref: [1, 2z] f32     out_ref: [tm, 2z] bf16
    #
    # Note: with a cdiv grid the last block may contain rows past N; all ops
    # here are row-local (elementwise + matmul over the in-bounds K=64 axis),
    # so garbage in those rows never mixes into kept rows, and their stores
    # are masked by Pallas.

    # Hidden layer: Linear(64, 64) + ReLU. Cast x to bf16 right at the MXU
    # matmul (f32 accumulation); bias add / ReLU stay in f32 (v5e-safe).
    x = x_ref[...].astype(jnp.bfloat16)
    h = jnp.dot(x, w1_ref[...], preferred_element_type=jnp.float32)
    h = jnp.maximum(h + b1_ref[...], 0.0)

    # Output layer: Linear(64, 2*z_dim), fully in f32 (tiny matmul; skipping
    # the bf16 cast of h is perf-neutral and accuracy-positive).
    p = jnp.dot(h, w2_ref[...], preferred_element_type=jnp.float32) + b2_ref[...]

    # Apply softplus(+1e-7) only to the sigma half via a lane mask, then do a
    # single packed bf16 store (no in-kernel lane-offset slicing).
    z = out_ref.shape[-1] // 2
    col = jax.lax.broadcasted_iota(jnp.int32, p.shape, 1)
    softplus = jnp.maximum(p, 0.0) + jnp.log1p(jnp.exp(-jnp.abs(p))) + 1e-7
    out_ref[...] = jnp.where(col < z, p, softplus).astype(out_ref.dtype)


@functools.partial(jax.jit, static_argnames=("z_dim", "block_rows"))
def encoder_forward(x, w1, b1, w2, b2, z_dim, block_rows=2048):
    """x: [N, 64] float32.  w1: [64, 64], b1: [64], w2: [2*z_dim, 64], b2: [2*z_dim]
    (PyTorch Linear layouts).  Returns (mu, sigma), each [N, z_dim] float32."""
    n, in_dim = x.shape
    out2 = 2 * z_dim

    # Tile the batch: tm rows per grid step (multiple of 8).  No padding of x;
    # the last block may be partial (Pallas masks OOB writes).
    n8 = _round_up(max(n, 1), 8)
    tm = min(block_rows, n8)
    # v7x has 2 TensorCores: when N is large enough that splitting is free,
    # make sure the "parallel" batch axis has at least 2 grid steps.
    if pl.cdiv(n, tm) < 2 and n8 > 1024:
        tm = _round_up(pl.cdiv(n8, 2), 8)
    grid = (pl.cdiv(n, tm),)

    # Resident operands: w1 in bf16 for the MXU; tiny w2 and biases in f32.
    # Transposes to (in, out) layout are folded by jit.
    w1_t = w1.T.astype(jnp.bfloat16)            # [64, 64]
    w2_t = w2.T.astype(jnp.float32)             # [64, 2*z_dim]
    b1_r = b1.reshape(1, -1).astype(jnp.float32)
    b2_r = b2.reshape(1, -1).astype(jnp.float32)

    cost = pl.CostEstimate(
        flops=2 * n * in_dim * (in_dim + out2),
        transcendentals=2 * n * out2,            # exp + log1p over the packed block
        bytes_accessed=(n * in_dim * 4           # x (f32, single read)
                        + n * out2 * 2           # packed output (bf16)
                        + in_dim * in_dim * 2    # w1 (bf16)
                        + in_dim * out2 * 4      # w2 (f32)
                        + (in_dim + out2) * 4),  # biases (f32)
    )

    params = pl.pallas_call(
        encoder_kernel,
        out_shape=jax.ShapeDtypeStruct((n, out2), jnp.bfloat16),
        grid=grid,
        in_specs=[
            pl.BlockSpec((tm, in_dim), lambda i: (i, 0)),      # x: pipelined
            pl.BlockSpec((in_dim, in_dim), lambda i: (0, 0)),  # w1: resident
            pl.BlockSpec((1, in_dim), lambda i: (0, 0)),       # b1: resident
            pl.BlockSpec((in_dim, out2), lambda i: (0, 0)),    # w2: resident
            pl.BlockSpec((1, out2), lambda i: (0, 0)),         # b2: resident
        ],
        out_specs=pl.BlockSpec((tm, out2), lambda i: (i, 0)),
        compiler_params=pltpu.CompilerParams(
            dimension_semantics=("parallel",)),
        cost_estimate=cost,
    )(x, w1_t, b1_r, w2_t, b2_r)

    mu = params[:, :z_dim].astype(jnp.float32)
    sigma = params[:, z_dim:].astype(jnp.float32)  # softplus + 1e-7 applied in-kernel
    return mu, sigma


def _reference(x, w1, b1, w2, b2, z_dim):
    # Pure-JAX f32 reference of the torch forward pass.
    h = jnp.maximum(x @ w1.T + b1, 0.0)
    params = h @ w2.T + b2
    mu = params[:, :z_dim]
    s = params[:, z_dim:]
    sigma = jnp.logaddexp(s, 0.0) + 1e-7
    return mu, sigma


if __name__ == "__main__":
    # TODO(synk): the torch module returns Independent(Normal(mu, sigma), 1);
    # we return (mu, sigma), which fully parameterize that distribution.
    z_dim = 2
    batch = 8
    in_dim = 64

    key = jax.random.PRNGKey(0)
    kx, kw1, kb1, kw2, kb2 = jax.random.split(key, 5)

    # Deterministic synthetic parameters (PyTorch Linear shapes: W is [out, in]).
    x = jax.random.normal(kx, (batch, in_dim), dtype=jnp.float32)
    lim1 = 1.0 / (in_dim ** 0.5)
    w1 = jax.random.uniform(kw1, (64, 64), jnp.float32, -lim1, lim1)
    b1 = jax.random.uniform(kb1, (64,), jnp.float32, -lim1, lim1)
    lim2 = 1.0 / (64 ** 0.5)
    w2 = jax.random.uniform(kw2, (2 * z_dim, 64), jnp.float32, -lim2, lim2)
    b2 = jax.random.uniform(kb2, (2 * z_dim,), jnp.float32, -lim2, lim2)

    mu, sigma = encoder_forward(x, w1, b1, w2, b2, z_dim=z_dim)
    jax.block_until_ready((mu, sigma))

    mu_ref, sigma_ref = _reference(x, w1, b1, w2, b2, z_dim)
    assert mu.shape == (batch, z_dim) and sigma.shape == (batch, z_dim)
    # bf16 matmul operands / bf16 packed output => relaxed tolerance vs f32 ref.
    assert jnp.allclose(mu, mu_ref, atol=3e-2, rtol=3e-2)
    assert jnp.allclose(sigma, sigma_ref, atol=3e-2, rtol=3e-2)
    assert bool(jnp.all(sigma > 0))

    print("KERNEL_OK")
</pallas_src>

<mosaic_0001>
module attributes {stable_mosaic.version = 11 : i64} {
  func.func @encoder_kernel(%arg0: i32, %arg1: memref<8x64xf32, #tpu.memory_space<vmem>>, %arg2: memref<64x64xbf16, #tpu.memory_space<vmem>>, %arg3: memref<1x64xf32, #tpu.memory_space<vmem>>, %arg4: memref<64x4xf32, #tpu.memory_space<vmem>>, %arg5: memref<1x4xf32, #tpu.memory_space<vmem>>, %arg6: memref<8x4xbf16, #tpu.memory_space<vmem>>) attributes {dimension_semantics = [#tpu.dimension_semantics<parallel>], iteration_bounds = array<i64: 1>, scalar_prefetch = 0 : i64, scratch_operands = 0 : i64, tpu.core_type = #tpu.core_type<tc>, window_params = [{transform_indices = @transform_0, window_bounds = array<i64: 8, 64>}, {pipeline_mode = #tpu.pipeline_mode<synchronous>, transform_indices = @transform_1, window_bounds = array<i64: 64, 64>}, {pipeline_mode = #tpu.pipeline_mode<synchronous>, transform_indices = @transform_2, window_bounds = array<i64: 1, 64>}, {pipeline_mode = #tpu.pipeline_mode<synchronous>, transform_indices = @transform_3, window_bounds = array<i64: 64, 4>}, {pipeline_mode = #tpu.pipeline_mode<synchronous>, transform_indices = @transform_4, window_bounds = array<i64: 1, 4>}, {transform_indices = @transform_5, window_bounds = array<i64: 8, 4>}]} {
    %c0 = arith.constant 0 : index
    %c0_0 = arith.constant 0 : index
    %0 = vector.load %arg1[%c0, %c0_0] : memref<8x64xf32, #tpu.memory_space<vmem>>, vector<8x64xf32>
    %1 = arith.truncf %0 : vector<8x64xf32> to vector<8x64xbf16>
    %c0_1 = arith.constant 0 : index
    %c0_2 = arith.constant 0 : index
    %2 = vector.load %arg2[%c0_1, %c0_2] : memref<64x64xbf16, #tpu.memory_space<vmem>>, vector<64x64xbf16>
    %cst = arith.constant dense<0.000000e+00> : vector<8x64xf32>
    %3 = tpu.matmul %1, %2, %cst {dimension_numbers = #tpu.dot_dimension_numbers<[1], [0], [0], [1], [0, 0, 1, 1], [], []>} : vector<8x64xbf16>, vector<64x64xbf16>, vector<8x64xf32> -> vector<8x64xf32>
    %c0_3 = arith.constant 0 : index
    %c0_4 = arith.constant 0 : index
    %4 = vector.load %arg3[%c0_3, %c0_4] : memref<1x64xf32, #tpu.memory_space<vmem>>, vector<1x64xf32>
    %5 = vector.broadcast %4 : vector<1x64xf32> to vector<8x64xf32>
    %6 = arith.addf %3, %5 : vector<8x64xf32>
    %cst_5 = arith.constant 0.000000e+00 : f32
    %7 = vector.broadcast %cst_5 : f32 to vector<8x64xf32>
    %8 = arith.maximumf %6, %7 : vector<8x64xf32>
    %c0_6 = arith.constant 0 : index
    %c0_7 = arith.constant 0 : index
    %9 = vector.load %arg4[%c0_6, %c0_7] : memref<64x4xf32, #tpu.memory_space<vmem>>, vector<64x4xf32>
    %cst_8 = arith.constant dense<0.000000e+00> : vector<8x4xf32>
    %10 = tpu.matmul %8, %9, %cst_8 {dimension_numbers = #tpu.dot_dimension_numbers<[1], [0], [0], [1], [0, 0, 1, 1], [], []>} : vector<8x64xf32>, vector<64x4xf32>, vector<8x4xf32> -> vector<8x4xf32>
    %c0_9 = arith.constant 0 : index
    %c0_10 = arith.constant 0 : index
    %11 = vector.load %arg5[%c0_9, %c0_10] : memref<1x4xf32, #tpu.memory_space<vmem>>, vector<1x4xf32>
    %12 = vector.broadcast %11 : vector<1x4xf32> to vector<8x4xf32>
    %13 = arith.addf %10, %12 : vector<8x4xf32>
    %14 = tpu.iota {dimensions = array<i32: 1>} : vector<8x4xi32>
    %cst_11 = arith.constant 0.000000e+00 : f32
    %15 = vector.broadcast %cst_11 : f32 to vector<8x4xf32>
    %16 = arith.maximumf %13, %15 : vector<8x4xf32>
    %17 = math.absf %13 : vector<8x4xf32>
    %cst_12 = arith.constant 0.000000e+00 : f32
    %18 = vector.broadcast %cst_12 : f32 to vector<8x4xf32>
    %19 = arith.subf %18, %17 : vector<8x4xf32>
    %20 = math.exp %19 : vector<8x4xf32>
    %21 = math.log1p %20 : vector<8x4xf32>
    %22 = arith.addf %16, %21 : vector<8x4xf32>
    %cst_13 = arith.constant 1.000000e-07 : f32
    %23 = vector.broadcast %cst_13 : f32 to vector<8x4xf32>
    %24 = arith.addf %22, %23 : vector<8x4xf32>
    %c2_i32 = arith.constant 2 : i32
    %25 = vector.broadcast %c2_i32 : i32 to vector<8x4xi32>
    %26 = arith.cmpi slt, %14, %25 : vector<8x4xi32>
    %27 = arith.select %26, %13, %24 : vector<8x4xi1>, vector<8x4xf32>
    %28 = arith.truncf %27 : vector<8x4xf32> to vector<8x4xbf16>
    %c0_14 = arith.constant 0 : index
    %c0_15 = arith.constant 0 : index
    %29 = vector.load %arg6[%c0_14, %c0_15] : memref<8x4xbf16, #tpu.memory_space<vmem>>, vector<8x4xbf16>
    tpu.vector_store %arg6[%c0_14, %c0_15], %28 {strides = array<i32>} : memref<8x4xbf16, #tpu.memory_space<vmem>>, vector<8x4xbf16>,
    return
  }
  func.func @transform_0(%arg0: i32) -> (i32, i32) {
    %c0_i32 = arith.constant 0 : i32
    %c0_i32_0 = arith.constant 0 : i32
    return %arg0, %c0_i32 : i32, i32
  }
  func.func @transform_1(%arg0: i32) -> (i32, i32) {
    %c0_i32 = arith.constant 0 : i32
    %c0_i32_0 = arith.constant 0 : i32
    %c0_i32_1 = arith.constant 0 : i32
    return %c0_i32, %c0_i32_0 : i32, i32
  }
  func.func @transform_2(%arg0: i32) -> (i32, i32) {
    %c0_i32 = arith.constant 0 : i32
    %c0_i32_0 = arith.constant 0 : i32
    %c0_i32_1 = arith.constant 0 : i32
    return %c0_i32, %c0_i32_0 : i32, i32
  }
  func.func @transform_3(%arg0: i32) -> (i32, i32) {
    %c0_i32 = arith.constant 0 : i32
    %c0_i32_0 = arith.constant 0 : i32
    %c0_i32_1 = arith.constant 0 : i32
    return %c0_i32, %c0_i32_0 : i32, i32
  }
  func.func @transform_4(%arg0: i32) -> (i32, i32) {
    %c0_i32 = arith.constant 0 : i32
    %c0_i32_0 = arith.constant 0 : i32
    %c0_i32_1 = arith.constant 0 : i32
    return %c0_i32, %c0_i32_0 : i32, i32
  }
  func.func @transform_5(%arg0: i32) -> (i32, i32) {
    %c0_i32 = arith.constant 0 : i32
    %c0_i32_0 = arith.constant 0 : i32
    return %arg0, %c0_i32 : i32, i32
  }
}

</mosaic_0001>

<llo_original>
// kernel: encoder_forward.1
$region0: #{encoder_forward.1}
  #allocation0 [shape = 'u32[]', space=smem, size = 0x4, offset = 0x4, fixed_abs, tag = 'smem constant byte address 0x4 - core index']
  #allocation1 [shape = 'u32[144,128]{1,0:T(1,128)}', space=vmem, size = 0x12000, scoped, tag = 'internal scratch']
  %s0 = inlined_call_operand.vmem [shape: f32[8,64], index: 0, kind: input, shape index: {}]
  %s1 = inlined_call_operand.vmem [shape: bf16[64,64], index: 1, kind: input, shape index: {}]
  %s2 = inlined_call_operand.vmem [shape: f32[1,64], index: 2, kind: input, shape index: {}]
  %s3 = inlined_call_operand.vmem [shape: f32[64,4], index: 3, kind: input, shape index: {}]
  %s4 = inlined_call_operand.vmem [shape: f32[1,4], index: 4, kind: input, shape index: {}]
  %s5 = inlined_call_operand.vmem [shape: bf16[8,4], index: 5, kind: output, shape index: {}]
  %s6 = sld [smem:[#allocation0]]
  $region30: #{encoder_forward.1} parent=0
    _
  %s8 = ssub.s32 1, %s6
  %s9 = scalar_select 0, %s8, %s6
  // Predicated region
  $region2: #{encoder_forward.1} parent=0 // pred_check
    _
  $region3: #{encoder_forward.1} parent=0 // pred_check_branch
    %11 = sbr.rel (0) target = $region5
  $region4: #{encoder_forward.1} parent=0 // pred_region
    _
  $region5: #{encoder_forward.1} parent=0 // pred_fallthru
    _
  // Predicated region
  $region6: #{encoder_forward.1} parent=0 // pred_check
    _
  $region7: #{encoder_forward.1} parent=0 // pred_check_branch
    %13 = sbr.rel (0) target = $region9
  $region8: #{encoder_forward.1} parent=0 // pred_region
    _
  $region9: #{encoder_forward.1} parent=0 // pred_fallthru
    _
  // Predicated region
  $region10: #{encoder_forward.1} parent=0 // pred_check
    _
  $region11: #{encoder_forward.1} parent=0 // pred_check_branch
    %15 = sbr.rel (0) target = $region13
  $region12: #{encoder_forward.1} parent=0 // pred_region
    _
  $region13: #{encoder_forward.1} parent=0 // pred_fallthru
    _
  // Predicated region
  $region14: #{encoder_forward.1} parent=0 // pred_check
    _
  $region15: #{encoder_forward.1} parent=0 // pred_check_branch
    %17 = sbr.rel (0) target = $region17
  $region16: #{encoder_forward.1} parent=0 // pred_region
    _
  $region17: #{encoder_forward.1} parent=0 // pred_fallthru
    _
  // Predicated region
  $region18: #{encoder_forward.1} parent=0 // pred_check
    _
  $region19: #{encoder_forward.1} parent=0 // pred_check_branch
    %19 = sbr.rel (0) target = $region21
  $region20: #{encoder_forward.1} parent=0 // pred_region
    _
  $region21: #{encoder_forward.1} parent=0 // pred_fallthru
    _
  %v21 = vld [vmem:[%s0] sm:$0xff]
  %v22 = vpack.c.bf16 %v21, %v21
  %v23 = vld [vmem:[%s1] sm:$0xf]
  %v24 = vld [vmem:[%s1 + $0x4] sm:$0xf]
  %v25 = vld [vmem:[%s1 + $0x8] sm:$0xf]
  %v26 = vld [vmem:[%s1 + $0xc] sm:$0xf]
  %v27 = vld [vmem:[%s1 + $0x10] sm:$0xf]
  %v28 = vld [vmem:[%s1 + $0x14] sm:$0xf]
  %v29 = vld [vmem:[%s1 + $0x18] sm:$0xf]
  %v30 = vld [vmem:[%s1 + $0x1c] sm:$0xf]
  %v31 = vld [vmem:[%s2] sm:$0x1]
  %v33 = vlaneseq
  %v34 = vshrl.u32 %v33, 7
  %v35 = vsub.s32 0, %v34
  %v36 = vrot.slane %v31, %v35
  %v46 = vunpack.c.l.b16 %v23
  %v47 = vunpack.c.l.b16 %v24
  %v48 = vunpack.c.l.b16 %v25
  %v49 = vunpack.c.l.b16 %v26
  %v50 = vunpack.c.l.b16 %v27
  %v51 = vunpack.c.l.b16 %v28
  %v52 = vunpack.c.l.b16 %v29
  %v53 = vunpack.c.l.b16 %v30
  %v54 = vpack.c.b16 %v47, %v46
  %v55 = vpack.c.b16 %v49, %v48
  %v56 = vpack.c.b16 %v51, %v50
  %v57 = vpack.c.b16 %v53, %v52
  %vm62 = vcmask 523264
  %v64 = vsel %vm62, %v22, 0
  %66 = vmatprep.subr.bf16.mxu0 0
  %67 = vmatpush1.bf16.msra.mxu0 %v54
  %68 = vmatprep.subr.bf16.mxu0 0
  %69 = vmatpush1.bf16.msra.mxu0 %v55
  %70 = vmatprep.subr.bf16.mxu0 0
  %71 = vmatpush1.bf16.msra.mxu0 %v56
  %72 = vmatprep.subr.bf16.mxu0 0
  %73 = vmatpush1.bf16.msra.mxu0 %v57
  %74 = vmatprep.subr.bf16.mxu0 0
  %75 = vmatpush1.bf16.msra.mxu0 0
  %76 = vmatprep.subr.bf16.mxu0 0
  %77 = vmatpush1.bf16.msra.mxu0 0
  %78 = vmatprep.subr.bf16.mxu0 0
  %79 = vmatpush1.bf16.msra.mxu0 0
  %80 = vmatprep.subr.bf16.mxu0 0
  %81 = vmatpush1.bf16.msra.mxu0 0
  %82 = vmatprep.subr.bf16.mxu0 0
  %83 = vmatpush1.bf16.msra.mxu0 0
  %84 = vmatprep.subr.bf16.mxu0 0
  %85 = vmatpush1.bf16.msra.mxu0 0
  %86 = vmatprep.subr.bf16.mxu0 0
  %87 = vmatpush1.bf16.msra.mxu0 0
  %88 = vmatprep.subr.bf16.mxu0 0
  %89 = vmatpush1.bf16.msra.mxu0 0
  %90 = vmatprep.subr.bf16.mxu0 0
  %91 = vmatpush1.bf16.msra.mxu0 0
  %92 = vmatprep.subr.bf16.mxu0 0
  %93 = vmatpush1.bf16.msra.mxu0 0
  %94 = vmatprep.subr.bf16.mxu0 0
  %95 = vmatpush1.bf16.msra.mxu0 0
  %96 = vmatprep.subr.bf16.mxu0 0
  %97 = vmatpush1.bf16.msra.mxu0 0
  %98 = vmatprep.mubr.bf16.mxu0 0
  %99 = vmatmul.mubr.bf16.gmra.mrb[0].mxu0 %v64
  %v100 = vpop.f32.mrb[0].mxu0
  %v101 = vadd.f32 %v36, %v100
  %v102 = vpop.f32.mrb[0].mxu0
  %v103 = vpop.f32.mrb[0].mxu0
  %v104 = vpop.f32.mrb[0].mxu0
  %105 = vdwg.mxu0
  %v106 = vmax.f32 %v101, 0.0
  %v107 = vld [vmem:[%s3] sm:$0xff]
  %v108 = vld [vmem:[%s3 + $0x8] sm:$0xff]
  %v109 = vld [vmem:[%s3 + $0x10] sm:$0xff]
  %v110 = vld [vmem:[%s3 + $0x18] sm:$0xff]
  %v111 = vld [vmem:[%s3 + $0x20] sm:$0xff]
  %v112 = vld [vmem:[%s3 + $0x28] sm:$0xff]
  %v113 = vld [vmem:[%s3 + $0x30] sm:$0xff]
  %v114 = vld [vmem:[%s3 + $0x38] sm:$0xff]
  %v115 = vld [vmem:[%s4] sm:$0x1]
  %v117 = vlaneseq
  %v118 = vshrl.u32 %v117, 7
  %v119 = vsub.s32 0, %v118
  %v120 = vrot.slane %v115, %v119
  %v123 = vsel %vm62, %v106, 0
  %125 = vmatprep.subr.mxu0 0.0
  %126 = vmatpush1.msra.mxu0 %v107
  %127 = vmatprep.subr.mxu0 0.0
  %128 = vmatpush1.msra.mxu0 %v108
  %129 = vmatprep.subr.mxu0 0.0
  %130 = vmatpush1.msra.mxu0 %v109
  %131 = vmatprep.subr.mxu0 0.0
  %132 = vmatpush1.msra.mxu0 %v110
  %133 = vmatprep.subr.mxu0 0.0
  %134 = vmatpush1.msra.mxu0 %v111
  %135 = vmatprep.subr.mxu0 0.0
  %136 = vmatpush1.msra.mxu0 %v112
  %137 = vmatprep.subr.mxu0 0.0
  %138 = vmatpush1.msra.mxu0 %v113
  %139 = vmatprep.subr.mxu0 0.0
  %140 = vmatpush1.msra.mxu0 %v114
  %141 = vmatprep.subr.mxu0 0.0
  %142 = vmatpush1.msra.mxu0 0.0
  %143 = vmatprep.subr.mxu0 0.0
  %144 = vmatpush1.msra.mxu0 0.0
  %145 = vmatprep.subr.mxu0 0.0
  %146 = vmatpush1.msra.mxu0 0.0
  %147 = vmatprep.subr.mxu0 0.0
  %148 = vmatpush1.msra.mxu0 0.0
  %149 = vmatprep.subr.mxu0 0.0
  %150 = vmatpush1.msra.mxu0 0.0
  %151 = vmatprep.subr.mxu0 0.0
  %152 = vmatpush1.msra.mxu0 0.0
  %153 = vmatprep.subr.mxu0 0.0
  %154 = vmatpush1.msra.mxu0 0.0
  %155 = vmatprep.subr.mxu0 0.0
  %156 = vmatpush1.msra.mxu0 0.0
  %157 = vmatprep.subr.mxu0 0.0
  %158 = vmatpush1.msra.mxu0 0.0
  %159 = vmatprep.subr.mxu0 0.0
  %160 = vmatpush1.msra.mxu0 0.0
  %161 = vmatprep.subr.mxu0 0.0
  %162 = vmatpush1.msra.mxu0 0.0
  %163 = vmatprep.subr.mxu0 0.0
  %164 = vmatpush1.msra.mxu0 0.0
  %165 = vmatprep.subr.mxu0 0.0
  %166 = vmatpush1.msra.mxu0 0.0
  %167 = vmatprep.subr.mxu0 0.0
  %168 = vmatpush1.msra.mxu0 0.0
  %169 = vmatprep.subr.mxu0 0.0
  %170 = vmatpush1.msra.mxu0 0.0
  %171 = vmatprep.subr.mxu0 0.0
  %172 = vmatpush1.msra.mxu0 0.0
  %173 = vmatprep.subr.mxu0 0.0
  %174 = vmatpush1.msra.mxu0 0.0
  %175 = vmatprep.subr.mxu0 0.0
  %176 = vmatpush1.msra.mxu0 0.0
  %177 = vmatprep.subr.mxu0 0.0
  %178 = vmatpush1.msra.mxu0 0.0
  %179 = vmatprep.subr.mxu0 0.0
  %180 = vmatpush1.msra.mxu0 0.0
  %181 = vmatprep.subr.mxu0 0.0
  %182 = vmatpush1.msra.mxu0 0.0
  %183 = vmatprep.subr.mxu0 0.0
  %184 = vmatpush1.msra.mxu0 0.0
  %185 = vmatprep.subr.mxu0 0.0
  %186 = vmatpush1.msra.mxu0 0.0
  %187 = vmatprep.subr.mxu0 0.0
  %188 = vmatpush1.msra.mxu0 0.0
  %189 = vmatprep.mubr.f32.mxu0 0.0
  %190 = vmatmul.mubr.f32.gmra.mrb[0].mxu0 %v123
  %v191 = vpop.f32.mrb[0].mxu0
  %v192 = vadd.f32 %v120, %v191
  %v193 = vpop.f32.mrb[0].mxu0
  %194 = vdwg.mxu0
  %v195 = vlaneseq
  %v196 = vand.u32 %v195, 127
  %v197 = vmax.f32 %v192, 0.0
  %v198 = vand.u32 2147483647, %v192
  %v199 = vsub.f32 0.0, %v198
  %v200 = vmul.f32 %v199, 1.442695
  %v201 = vpow.pop %v200
  %v202 = vadd.f32 %v201, 1.0
  %v203 = vlog2.pop %v202
  %v204 = vmul.f32 %v203, 0.6931472
  %v205 = vmul.f32 -0.5, %v201
  %v206 = vadd.f32 %v205, 1.0
  %v207 = vmul.f32 %v206, %v201
  %v208 = vand.u32 2147483647, %v201
  %vm209 = vcmp.lt.f32.partialorder %v208, 0.0004427343
  %v210 = vsel %vm209, %v207, %v204
  %v211 = vadd.f32 %v197, %v210
  %v212 = vadd.f32 %v211, 1e-07
  %vm213 = vcmp.lt.s32.totalorder %v196, 2
  %v214 = vsel %vm213, %v192, %v212
  %v215 = vpack.c.bf16 %v214, %v214
  %vm216 = vcmask 27648
  %217 = vst.msk [vmem:[%s5] sm:$0xf] %vm216, %v215
  // Predicated region
  $region22: #{encoder_forward.1} parent=0 // pred_check
    _
  $region23: #{encoder_forward.1} parent=0 // pred_check_branch
    %219 = sbr.rel (0) target = $region25
  $region24: #{encoder_forward.1} parent=0 // pred_region
    _
  $region25: #{encoder_forward.1} parent=0 // pred_fallthru
    _
  // Predicated region
  $region26: #{encoder_forward.1} parent=0 // pred_check
    _
  $region27: #{encoder_forward.1} parent=0 // pred_check_branch
    %221 = sbr.rel (0) target = $region29
  $region28: #{encoder_forward.1} parent=0 // pred_region
    _
  $region29: #{encoder_forward.1} parent=0 // pred_fallthru
    _

</llo_original>
